<compile_context>
chip_gen: v5e
topology: v5e:2x2
jax: 0.10.0
libtpu: 0.0.40
codegen_flags: <defaults>
</compile_context>

<pallas_src>
import functools

import jax
import jax.numpy as jnp
from jax.experimental import pallas as pl
from jax.experimental.pallas import tpu as pltpu


def _iwt_kernel(x_ref, o_ref, *, compute_dtype):
    # x_ref: (4, TC, TH, W)  -- the four wavelet sub-bands for TC output channels
    # o_ref: (TC, TH, 4W)    -- [even-row column-interleave | odd-row column-interleave]
    tc, th, w = x_ref.shape[1], x_ref.shape[2], x_ref.shape[3]

    x1 = x_ref[0].astype(compute_dtype)
    x2 = x_ref[1].astype(compute_dtype)
    x3 = x_ref[2].astype(compute_dtype)
    x4 = x_ref[3].astype(compute_dtype)

    half = jnp.asarray(0.5, dtype=compute_dtype)
    # Butterfly with the 0.5 scale folded in: 8 adds + 4 muls per element.
    a = (x1 + x4) * half
    b = (x1 - x4) * half
    c = (x2 + x3) * half
    d = (x2 - x3) * half

    od = o_ref.dtype
    # Cast down BEFORE the lane interleave: halves XLU/store work for 16-bit.
    ee = (a - c).astype(od)   # h[0::2, 0::2]
    eo = (b + d).astype(od)   # h[0::2, 1::2]
    oe = (b - d).astype(od)   # h[1::2, 0::2]
    oo = (a + c).astype(od)   # h[1::2, 1::2]

    # Column (lane) interleave only; the row interleave is a free reshape
    # outside the kernel because the output is stored as (H, 4W).
    even_rows = jnp.stack([ee, eo], axis=-1).reshape(tc, th, 2 * w)
    odd_rows = jnp.stack([oe, oo], axis=-1).reshape(tc, th, 2 * w)

    # Store the two halves directly (no concatenate temporary).
    o_ref[..., : 2 * w] = even_rows
    o_ref[..., 2 * w:] = odd_rows


def _tpu_vmem_capacity_bytes() -> int:
    try:
        return int(pltpu.get_tpu_info().vmem_capacity_bytes)
    except Exception:
        return 128 << 20  # conservative default (v5e / v6e)


def _is_v5() -> bool:
    try:
        return "v5" in jax.devices()[0].device_kind.lower()
    except Exception:
        return False


def _pick_block(b, oc, h, w, itemsize, target, sublane, min_steps=8):
    """Pick (TC output channels, TH rows) per grid step.

    * One input block is 4*tc*th*w*itemsize bytes; aim for ~`target` bytes.
    * th is a multiple-of-`sublane` divisor of H.  If H is not sublane-aligned
      we keep th = H (the explicit vmem_limit in the caller absorbs that case).
    * Finally shrink the block, if possible, so the grid has >= `min_steps`
      steps (keeps the DMA pipeline busy and lets v7x use both TensorCores).
    """
    # Rows per block.
    th = h
    per_channel = 4 * h * w * itemsize
    if per_channel > target and h % sublane == 0:
        cands = [d for d in range(sublane, h + 1, sublane)
                 if h % d == 0 and 4 * d * w * itemsize <= target]
        th = max(cands) if cands else sublane

    # Channels per block.
    per_block_channel = 4 * th * w * itemsize
    tc = max(1, min(oc, target // max(per_block_channel, 1)))
    while oc % tc:
        tc -= 1

    def steps(tc_, th_):
        return b * (oc // tc_) * (h // th_)

    # Ensure enough grid steps for pipelining / megacore sharding.
    while steps(tc, th) < min_steps and tc > 1:
        tc -= 1
        while oc % tc:
            tc -= 1
    if h % sublane == 0:
        while steps(tc, th) < min_steps and th > sublane:
            cands = [d for d in range(sublane, th, sublane) if h % d == 0]
            if not cands:
                break
            th = max(cands)

    return tc, th


def iwt_pallas(x: jax.Array) -> jax.Array:
    """Pallas IWT. x: (B, C, H, W), C divisible by 4 -> (B, C//4, 2H, 2W)."""
    B, C, H, W = x.shape
    assert C % 4 == 0, "in_channel must be divisible by 4"
    OC = C // 4

    # Group channels as (B, 4, OC, H, W): quarter q, out-channel c maps to
    # original channel q * OC + c (matches the PyTorch slicing). Free reshape.
    x_r = x.reshape(B, 4, OC, H, W)

    itemsize = x.dtype.itemsize
    sublane = max(8, 32 // itemsize)            # 8 f32, 16 bf16, 32 int8/fp8
    vmem_cap = _tpu_vmem_capacity_bytes()
    target = max(512 << 10, vmem_cap // 64)     # ~2 MiB @128MiB VMEM, ~1 MiB on v7x

    tc, th = _pick_block(B, OC, H, W, itemsize, target, sublane)
    grid = (B, OC // tc, H // th)

    # Compute dtype: keep bf16/f16 native on v6e/v7x; upcast on v5e (no bf16 VPU).
    if x.dtype in (jnp.bfloat16, jnp.float16) and not _is_v5():
        compute_dtype = x.dtype
    else:
        compute_dtype = jnp.float32

    # Explicit scoped-VMEM limit: 2x double-buffered in + 2x out + temporaries,
    # with margin; never below 32 MiB, never above half the physical VMEM.
    block_in_bytes = 4 * tc * th * W * itemsize
    vmem_limit = int(min(max(32 << 20, 10 * block_in_bytes),
                         max(vmem_cap // 2, 32 << 20)))

    # NOTE: if W < 32 (so 4W < 128) the output store is a masked partial vst;
    # production image sizes (W >= 32) are lane-dense.
    out_flat = pl.pallas_call(
        functools.partial(_iwt_kernel, compute_dtype=compute_dtype),
        out_shape=jax.ShapeDtypeStruct((B, OC, H, 4 * W), x.dtype),
        grid_spec=pltpu.PrefetchScalarGridSpec(
            num_scalar_prefetch=0,
            grid=grid,
            in_specs=[
                pl.BlockSpec(
                    (None, 4, tc, th, W),
                    lambda b, cb, hb: (b, 0, cb, hb, 0),
                ),
            ],
            out_specs=pl.BlockSpec(
                (None, tc, th, 4 * W),
                lambda b, cb, hb: (b, cb, hb, 0),
            ),
        ),
        compiler_params=pltpu.CompilerParams(
            # Every grid point writes a distinct output block -> fully parallel
            # (lets v7x shard across its 2 TensorCores; harmless on v5e/v6e).
            dimension_semantics=("parallel", "parallel", "parallel"),
            vmem_limit_bytes=vmem_limit,
        ),
    )(x_r)

    # (B, OC, H, 4W) row-major is bit-identical to (B, OC, 2H, 2W): row 2i is
    # the first 2W lanes of kernel row i, row 2i+1 is the last 2W lanes.
    return out_flat.reshape(B, OC, 2 * H, 2 * W)


def iwt_reference(x: jax.Array) -> jax.Array:
    """Pure-JAX reference matching the PyTorch module exactly."""
    B, C, H, W = x.shape
    OC = C // 4
    x1 = x[:, 0 * OC:1 * OC] / 2
    x2 = x[:, 1 * OC:2 * OC] / 2
    x3 = x[:, 2 * OC:3 * OC] / 2
    x4 = x[:, 3 * OC:4 * OC] / 2
    h = jnp.zeros((B, OC, 2 * H, 2 * W), dtype=x.dtype)
    h = h.at[:, :, 0::2, 0::2].set(x1 - x2 - x3 + x4)
    h = h.at[:, :, 1::2, 0::2].set(x1 - x2 + x3 - x4)
    h = h.at[:, :, 0::2, 1::2].set(x1 + x2 - x3 - x4)
    h = h.at[:, :, 1::2, 1::2].set(x1 + x2 + x3 + x4)
    return h


if __name__ == "__main__":
    key = jax.random.PRNGKey(0)
    k1, k2, k3 = jax.random.split(key, 3)

    # Shape implied by the module: B=2, C=4 (-> OC=1), H=W=16 (-> 32x32 output).
    x_small = jax.random.normal(k1, (2, 4, 16, 16), dtype=jnp.float32)
    out_small = jax.block_until_ready(iwt_pallas(x_small))
    ref_small = iwt_reference(x_small)
    assert out_small.shape == ref_small.shape == (2, 1, 32, 32)
    assert jnp.allclose(out_small, ref_small, atol=1e-5, rtol=1e-5), "mismatch (small)"

    # Multi-channel case to exercise the channel/row-blocked path.
    x_mc = jax.random.normal(k2, (2, 16, 16, 16), dtype=jnp.float32)
    out_mc = jax.block_until_ready(iwt_pallas(x_mc))
    ref_mc = iwt_reference(x_mc)
    assert out_mc.shape == ref_mc.shape == (2, 4, 32, 32)
    assert jnp.allclose(out_mc, ref_mc, atol=1e-5, rtol=1e-5), "mismatch (multi-channel)"

    # bf16 case exercises the cast-before-interleave / native-bf16-compute path.
    x_bf = jax.random.normal(k3, (2, 8, 16, 16), dtype=jnp.float32).astype(jnp.bfloat16)
    out_bf = jax.block_until_ready(iwt_pallas(x_bf))
    ref_bf = iwt_reference(x_bf.astype(jnp.float32))
    assert out_bf.shape == ref_bf.shape == (2, 2, 32, 32)
    assert jnp.allclose(out_bf.astype(jnp.float32), ref_bf, atol=5e-2, rtol=5e-2), \
        "mismatch (bf16)"

    print("KERNEL_OK")
</pallas_src>

<mosaic_0001>
module attributes {stable_mosaic.version = 11 : i64} {
  func.func @_iwt_kernel(%arg0: i32, %arg1: i32, %arg2: i32, %arg3: memref<1x4x1x8x16xf32, #tpu.memory_space<vmem>>, %arg4: memref<1x1x8x64xf32, #tpu.memory_space<vmem>>) attributes {dimension_semantics = [#tpu.dimension_semantics<parallel>, #tpu.dimension_semantics<parallel>, #tpu.dimension_semantics<parallel>], iteration_bounds = array<i64: 2, 1, 2>, scalar_prefetch = 0 : i64, scratch_operands = 0 : i64, tpu.core_type = #tpu.core_type<tc>, window_params = [{transform_indices = @transform_0, window_bounds = array<i64: 1, 4, 1, 8, 16>}, {transform_indices = @transform_1, window_bounds = array<i64: 1, 1, 8, 64>}]} {
    %c0 = arith.constant 0 : index
    %c0_0 = arith.constant 0 : index
    %c0_1 = arith.constant 0 : index
    %c0_2 = arith.constant 0 : index
    %c0_3 = arith.constant 0 : index
    %0 = vector.load %arg3[%c0, %c0_0, %c0_1, %c0_2, %c0_3] : memref<1x4x1x8x16xf32, #tpu.memory_space<vmem>>, vector<1x1x1x8x16xf32>
    %1 = vector.shape_cast %0 : vector<1x1x1x8x16xf32> to vector<1x8x16xf32>
    %c0_4 = arith.constant 0 : index
    %c1 = arith.constant 1 : index
    %c0_5 = arith.constant 0 : index
    %c0_6 = arith.constant 0 : index
    %c0_7 = arith.constant 0 : index
    %2 = vector.load %arg3[%c0_4, %c1, %c0_5, %c0_6, %c0_7] : memref<1x4x1x8x16xf32, #tpu.memory_space<vmem>>, vector<1x1x1x8x16xf32>
    %3 = vector.shape_cast %2 : vector<1x1x1x8x16xf32> to vector<1x8x16xf32>
    %c0_8 = arith.constant 0 : index
    %c2 = arith.constant 2 : index
    %c0_9 = arith.constant 0 : index
    %c0_10 = arith.constant 0 : index
    %c0_11 = arith.constant 0 : index
    %4 = vector.load %arg3[%c0_8, %c2, %c0_9, %c0_10, %c0_11] : memref<1x4x1x8x16xf32, #tpu.memory_space<vmem>>, vector<1x1x1x8x16xf32>
    %5 = vector.shape_cast %4 : vector<1x1x1x8x16xf32> to vector<1x8x16xf32>
    %c0_12 = arith.constant 0 : index
    %c3 = arith.constant 3 : index
    %c0_13 = arith.constant 0 : index
    %c0_14 = arith.constant 0 : index
    %c0_15 = arith.constant 0 : index
    %6 = vector.load %arg3[%c0_12, %c3, %c0_13, %c0_14, %c0_15] : memref<1x4x1x8x16xf32, #tpu.memory_space<vmem>>, vector<1x1x1x8x16xf32>
    %7 = vector.shape_cast %6 : vector<1x1x1x8x16xf32> to vector<1x8x16xf32>
    %8 = arith.addf %1, %7 : vector<1x8x16xf32>
    %cst = arith.constant 5.000000e-01 : f32
    %9 = vector.broadcast %cst : f32 to vector<1x8x16xf32>
    %10 = arith.mulf %8, %9 : vector<1x8x16xf32>
    %11 = arith.subf %1, %7 : vector<1x8x16xf32>
    %cst_16 = arith.constant 5.000000e-01 : f32
    %12 = vector.broadcast %cst_16 : f32 to vector<1x8x16xf32>
    %13 = arith.mulf %11, %12 : vector<1x8x16xf32>
    %14 = arith.addf %3, %5 : vector<1x8x16xf32>
    %cst_17 = arith.constant 5.000000e-01 : f32
    %15 = vector.broadcast %cst_17 : f32 to vector<1x8x16xf32>
    %16 = arith.mulf %14, %15 : vector<1x8x16xf32>
    %17 = arith.subf %3, %5 : vector<1x8x16xf32>
    %cst_18 = arith.constant 5.000000e-01 : f32
    %18 = vector.broadcast %cst_18 : f32 to vector<1x8x16xf32>
    %19 = arith.mulf %17, %18 : vector<1x8x16xf32>
    %20 = arith.subf %10, %16 : vector<1x8x16xf32>
    %21 = arith.addf %13, %19 : vector<1x8x16xf32>
    %22 = arith.subf %13, %19 : vector<1x8x16xf32>
    %23 = arith.addf %10, %16 : vector<1x8x16xf32>
    %24 = vector.shape_cast %20 : vector<1x8x16xf32> to vector<1x8x16x1xf32>
    %25 = vector.shape_cast %21 : vector<1x8x16xf32> to vector<1x8x16x1xf32>
    %26 = tpu.concatenate %24, %25 in 3 : vector<1x8x16x1xf32>, vector<1x8x16x1xf32> -> vector<1x8x16x2xf32>
    %27 = vector.shape_cast %26 : vector<1x8x16x2xf32> to vector<1x8x32xf32>
    %28 = vector.shape_cast %22 : vector<1x8x16xf32> to vector<1x8x16x1xf32>
    %29 = vector.shape_cast %23 : vector<1x8x16xf32> to vector<1x8x16x1xf32>
    %30 = tpu.concatenate %28, %29 in 3 : vector<1x8x16x1xf32>, vector<1x8x16x1xf32> -> vector<1x8x16x2xf32>
    %31 = vector.shape_cast %30 : vector<1x8x16x2xf32> to vector<1x8x32xf32>
    %c0_19 = arith.constant 0 : index
    %c0_20 = arith.constant 0 : index
    %c0_21 = arith.constant 0 : index
    %c0_22 = arith.constant 0 : index
    %32 = vector.load %arg4[%c0_19, %c0_20, %c0_21, %c0_22] : memref<1x1x8x64xf32, #tpu.memory_space<vmem>>, vector<1x1x8x32xf32>
    %33 = vector.shape_cast %32 : vector<1x1x8x32xf32> to vector<1x8x32xf32>
    %34 = vector.shape_cast %27 : vector<1x8x32xf32> to vector<1x1x8x32xf32>
    tpu.vector_store %arg4[%c0_19, %c0_20, %c0_21, %c0_22], %34 {strides = array<i32>} : memref<1x1x8x64xf32, #tpu.memory_space<vmem>>, vector<1x1x8x32xf32>,
    %c0_23 = arith.constant 0 : index
    %c0_24 = arith.constant 0 : index
    %c0_25 = arith.constant 0 : index
    %c32 = arith.constant 32 : index
    %35 = vector.load %arg4[%c0_23, %c0_24, %c0_25, %c32] : memref<1x1x8x64xf32, #tpu.memory_space<vmem>>, vector<1x1x8x32xf32>
    %36 = vector.shape_cast %35 : vector<1x1x8x32xf32> to vector<1x8x32xf32>
    %37 = vector.shape_cast %31 : vector<1x8x32xf32> to vector<1x1x8x32xf32>
    tpu.vector_store %arg4[%c0_23, %c0_24, %c0_25, %c32], %37 {strides = array<i32>} : memref<1x1x8x64xf32, #tpu.memory_space<vmem>>, vector<1x1x8x32xf32>,
    return
  }
  func.func @transform_0(%arg0: i32, %arg1: i32, %arg2: i32) -> (i32, i32, i32, i32, i32) {
    %c0_i32 = arith.constant 0 : i32
    %c0_i32_0 = arith.constant 0 : i32
    %c0_i32_1 = arith.constant 0 : i32
    return %arg0, %c0_i32, %arg1, %arg2, %c0_i32_0 : i32, i32, i32, i32, i32
  }
  func.func @transform_1(%arg0: i32, %arg1: i32, %arg2: i32) -> (i32, i32, i32, i32) {
    %c0_i32 = arith.constant 0 : i32
    %c0_i32_0 = arith.constant 0 : i32
    return %arg0, %arg1, %arg2, %c0_i32 : i32, i32, i32, i32
  }
}

</mosaic_0001>

<llo_original>
// kernel: tpu_custom_call.1
$region0: #{tpu_custom_call.1}
  #allocation0 [shape = 'u32[]', space=smem, size = 0x4, offset = 0x4, fixed_abs, tag = 'smem constant byte address 0x4 - core index']
  #allocation1 [shape = 'u32[72,128]{1,0:T(1,128)}', space=vmem, size = 0x9000, scoped, tag = 'internal scratch']
  %s0 = inlined_call_operand.hbm [shape: f32[2,4,1,16,16], index: 0, kind: input, shape index: {}]
  %s1 = inlined_call_operand.hbm [shape: f32[2,1,16,64], index: 1, kind: output, shape index: {}]
  %s2 = sld [smem:[#allocation0]]
  $region41: #{tpu_custom_call.1} parent=0
    _
  %s4 = ssub.s32 1, %s2
  %s5 = scalar_select 0, %s4, %s2
  $region1: #{tpu_custom_call.1} parent=0
    #allocation2 [shape = 'u8[32768]{0}', space=vmem, size = 0x8000, scoped, tag = 'input window, operand 0']
    #allocation3 [shape = 's32[2]{0}', space=sflag, size = 0x8, scoped, tag = 'scoped memory for tpu_custom_call.1']
    #allocation4 [shape = 's32[2]{0}', space=sflag, size = 0x8, scoped, tag = 'scoped memory for tpu_custom_call.1']
    #allocation5 [shape = 'u8[8192]{0}', space=vmem, size = 0x2000, scoped, tag = 'output window, operand 0']
    %6 = vsyncpa [#allocation3], 0
    %s7 = scalar_lea.sflag [#allocation3], 1
    %8 = vsyncpa %s7, 0
    %9 = vsyncpa [#allocation4], 0
    %s10 = scalar_lea.sflag [#allocation4], 1
    %11 = vsyncpa %s10, 0
    loop: start=0, step=1, limit=6
    $region2: #{tpu_custom_call.1} parent=1 // loop_pre_header
      _
    $region3: #{tpu_custom_call.1} parent=1 // loop_header
      %s13 = sphi 0, %s17
      %p14 = scmp.ge.s32.totalorder %s13, 6
      %s20 = sphi 0, %s39
      %s21 = sphi 0, %s35
      %s22 = sphi 0, %s31
      %s23 = sphi 0, %s20
      %s24 = sphi 0, %s21
      %s25 = sphi 0, %s22
      %s26 = sphi 0, %s23
      %s27 = sphi 0, %s24
      %s28 = sphi 0, %s25
      %s46 = sphi 0, %s48
      %s49 = sphi 0, %s46
      %s50 = sphi 0, %s49
      %s66 = sphi 0, %s50
      %s76 = sphi 0, %s78
      %s79 = sphi 0, %s76
      %s80 = sphi 0, %s79
      %s96 = sphi 0, %s80
    $region4: #{tpu_custom_call.1} parent=1 // loop_header_branch
      %16 = sbr.rel (%p14) target = $region8
    $region5: #{tpu_custom_call.1} parent=1 // loop_body
      %s18 = ssub.s32 %s13, 1
      %s19 = ssub.s32 %s13, 2
      %s29 = sadd.s32 1, %s22
      %p30 = scmp.ge.s32.totalorder %s29, 2
      %s31 = scalar_select %p30, 0, %s29
      %s32 = sadd.s32 1, %s21
      %s33 = scalar_select %p30, %s32, %s21
      %p34 = scmp.ge.s32.totalorder %s33, 1
      %s35 = scalar_select %p34, 0, %s33
      %s36 = sadd.s32 1, %s20
      %s37 = scalar_select %p34, %s36, %s20
      %p38 = scmp.ge.s32.totalorder %s37, 2
      %s39 = scalar_select %p38, 0, %s37
      %s40 = ssub.s32 %s20, %s39
      %s41 = ssub.s32 %s21, %s35
      %s42 = sor.u32 %s40, %s41
      %s43 = ssub.s32 %s22, %s31
      %s44 = sor.u32 %s42, %s43
      %p45 = scmp.eq.s32.totalorder %s44, 0
      %s47 = sadd.s32 %s46, 1
      %s48 = scalar_select %p45, %s46, %s47
      %p51 = pneg %p45
      %p52 = scmp.eq.s32.totalorder %s13, 3
      %p53 = por %p51, %p52
      %p54 = scmp.ne.s32.totalorder %s46, %s49
      %p55 = scmp.eq.s32.totalorder %s13, 0
      %p56 = por %p54, %p55
      %p57 = scmp.ne.s32.totalorder %s46, %s49
      %p58 = scmp.eq.s32.totalorder %s18, 3
      %p59 = por %p57, %p58
      %p60 = scmp.ne.s32.totalorder %s49, %s50
      %p61 = scmp.eq.s32.totalorder %s18, 0
      %p62 = por %p60, %p61
      %p63 = scmp.ne.s32.totalorder %s49, %s50
      %p64 = scmp.eq.s32.totalorder %s19, 3
      %p65 = por %p63, %p64
      %p67 = scmp.ne.s32.totalorder %s50, %s66
      %p68 = scmp.eq.s32.totalorder %s19, 0
      %p69 = por %p67, %p68
      %s70 = ssub.s32 %s20, %s39
      %s71 = ssub.s32 %s21, %s35
      %s72 = sor.u32 %s70, %s71
      %s73 = ssub.s32 %s22, %s31
      %s74 = sor.u32 %s72, %s73
      %p75 = scmp.eq.s32.totalorder %s74, 0
      %s77 = sadd.s32 %s76, 1
      %s78 = scalar_select %p75, %s76, %s77
      %p81 = pneg %p75
      %p82 = scmp.eq.s32.totalorder %s13, 3
      %p83 = por %p81, %p82
      %p84 = scmp.ne.s32.totalorder %s76, %s79
      %p85 = scmp.eq.s32.totalorder %s13, 0
      %p86 = por %p84, %p85
      %p87 = scmp.ne.s32.totalorder %s76, %s79
      %p88 = scmp.eq.s32.totalorder %s18, 3
      %p89 = por %p87, %p88
      %p90 = scmp.ne.s32.totalorder %s79, %s80
      %p91 = scmp.eq.s32.totalorder %s18, 0
      %p92 = por %p90, %p91
      %p93 = scmp.ne.s32.totalorder %s79, %s80
      %p94 = scmp.eq.s32.totalorder %s19, 3
      %p95 = por %p93, %p94
      %p97 = scmp.ne.s32.totalorder %s80, %s96
      %p98 = scmp.eq.s32.totalorder %s19, 0
      %p99 = por %p97, %p98
      %p100 = scmp.le.s32.totalorder 1, %s13
      %p101 = scmp.lt.s32.totalorder %s13, 5
      %p102 = pnand %p100, %p101
      %p103 = pneg %p102
      // Predicated region
      $region9: #{tpu_custom_call.1} parent=5 // pred_check
        _
      $region10: #{tpu_custom_call.1} parent=5 // pred_check_branch
        %105 = sbr.rel (%p102) target = $region12
      $region11: #{tpu_custom_call.1} parent=5 // pred_region
        %s106 = ssub.s32 %s13, 1
      $region12: #{tpu_custom_call.1} parent=5 // pred_fallthru
        _
      %p107 = scmp.lt.s32.totalorder %s13, 4
      // Predicated region
      $region13: #{tpu_custom_call.1} parent=5 // pred_check
        %p108 = pneg %p107
      $region14: #{tpu_custom_call.1} parent=5 // pred_check_branch
        %110 = sbr.rel (%p108) target = $region16
      $region15: #{tpu_custom_call.1} parent=5 // pred_region
        // Predicated region
        $region17: #{tpu_custom_call.1} parent=15 // pred_check
          %p111 = pneg %p56
        $region18: #{tpu_custom_call.1} parent=15 // pred_check_branch
          %113 = sbr.rel (%p111) target = $region20
        $region19: #{tpu_custom_call.1} parent=15 // pred_region
          %s114 = sand.u32 %s46, 1
          %s115 = scalar_lea.sflag [#allocation3], %s114
          %s116 = sand.u32 %s46, 1
          %s117 = smul.addr %s116, 32
          %s118 = scalar_lea.vmem [#allocation2], %s117
          %120 = vsyncadd %s115, 0
          %s121 = smul.addr %s21, 2
          %s122 = sadd.s32 %s22, %s121
          %s123 = smul.addr %s20, 8
          %s124 = sadd.s32 %s122, %s123
          %s125 = smul.addr %s124, 8
          %s126 = scalar_lea.hbm %s0, %s125
          %s127 = sshll.u32 %s126, 4
          %s128 = int_to_ptr.hbm [resolvable:$true] %s127
          %s129 = sshll.u32 %s118, 4
          %s130 = int_to_ptr.vmem [resolvable:$true] %s129
          %135 = dma.hbm_to_vmem [thread:$0]  %s128, 512, %s130, %s115, 256, 128, 8
        $region20: #{tpu_custom_call.1} parent=15 // pred_fallthru
          _
      $region16: #{tpu_custom_call.1} parent=5 // pred_fallthru
        _
      %p136 = scmp.le.s32.totalorder 1, %s13
      %p137 = scmp.lt.s32.totalorder %s13, 5
      %p138 = pnand %p136, %p137
      %p139 = pneg %p138
      // Predicated region
      $region21: #{tpu_custom_call.1} parent=5 // pred_check
        _
      $region22: #{tpu_custom_call.1} parent=5 // pred_check_branch
        %141 = sbr.rel (%p138) target = $region24
      $region23: #{tpu_custom_call.1} parent=5 // pred_region
        %s142 = ssub.s32 %s13, 1
        %s143 = sand.u32 %s49, 1
        %s144 = scalar_lea.sflag [#allocation3], %s143
        %s145 = sand.u32 %s49, 1
        %s146 = smul.addr %s145, 32
        %s147 = scalar_lea.vmem [#allocation2], %s146
        // Predicated region
        $region25: #{tpu_custom_call.1} parent=23 // pred_check
          %p148 = pneg %p62
        $region26: #{tpu_custom_call.1} parent=23 // pred_check_branch
          %150 = sbr.rel (%p148) target = $region28
        $region27: #{tpu_custom_call.1} parent=23 // pred_region
          %152 = dma.done %s144, 512
        $region28: #{tpu_custom_call.1} parent=23 // pred_fallthru
          _
        %s153 = sand.u32 %s49, 1
        %s154 = scalar_lea.sflag [#allocation3], %s153
        %s155 = sand.u32 %s49, 1
        %s156 = smul.addr %s155, 32
        %s157 = scalar_lea.vmem [#allocation2], %s156
        %p158 = pneg %p62
        %p159 = pneg %p59
        %p160 = pneg %p92
        %p161 = pneg %p89
        %s162 = sand.u32 %s79, 1
        %s163 = scalar_lea.sflag [#allocation4], %s162
        %s164 = sand.u32 %s79, 1
        %s165 = smul.addr %s164, 8
        %s166 = scalar_lea.vmem [#allocation5], %s165
        %v167 = vld [vmem:[%s147] sm:$0xff]
        %s168 = scalar_lea.vmem %s147, 8 [#allocation2]
        %v169 = vld [vmem:[%s168] sm:$0xff]
        %s170 = scalar_lea.vmem %s147, 16 [#allocation2]
        %v171 = vld [vmem:[%s170] sm:$0xff]
        %s172 = scalar_lea.vmem %s147, 24 [#allocation2]
        %v173 = vld [vmem:[%s172] sm:$0xff]
        %v174 = vadd.f32 %v167, %v173
        %v175 = vmul.f32 %v174, 0.5
        %v176 = vsub.f32 %v167, %v173
        %v177 = vmul.f32 %v176, 0.5
        %v178 = vadd.f32 %v169, %v171
        %v179 = vmul.f32 %v178, 0.5
        %v180 = vsub.f32 %v169, %v171
        %v181 = vmul.f32 %v180, 0.5
        %v182 = vsub.f32 %v175, %v179
        %v183 = vadd.f32 %v177, %v181
        %v184 = vsub.f32 %v177, %v181
        %v185 = vadd.f32 %v175, %v179
        %v186 = vperm.slane %v182, 0
        %v187 = vlaneseq
        %v188 = vshrl.u32 %v187, 7
        %190 = vset.pattern.permute.xlu0 %v188
        %191 = vperm.xlu0 %190, %v186
        %v192 = vpop.permute.xlu0 %191
        %v193 = vlaneseq
        %v194 = vshrl.u32 %v193, 7
        %v195 = vadd.s32 %v194, 8
        %196 = vset.pattern.permute.xlu0 %v195
        %197 = vperm.xlu0 %196, %v186
        %v198 = vpop.permute.xlu0 %197
        %v199 = vperm.slane %v182, 1
        %v200 = vlaneseq
        %v201 = vshrl.u32 %v200, 7
        %203 = vset.pattern.permute.xlu0 %v201
        %204 = vperm.xlu0 %203, %v199
        %v205 = vpop.permute.xlu0 %204
        %v206 = vlaneseq
        %v207 = vshrl.u32 %v206, 7
        %v208 = vadd.s32 %v207, 8
        %209 = vset.pattern.permute.xlu0 %v208
        %210 = vperm.xlu0 %209, %v199
        %v211 = vpop.permute.xlu0 %210
        %v212 = vperm.slane %v182, 2
        %v213 = vlaneseq
        %v214 = vshrl.u32 %v213, 7
        %216 = vset.pattern.permute.xlu0 %v214
        %217 = vperm.xlu0 %216, %v212
        %v218 = vpop.permute.xlu0 %217
        %v219 = vlaneseq
        %v220 = vshrl.u32 %v219, 7
        %v221 = vadd.s32 %v220, 8
        %222 = vset.pattern.permute.xlu0 %v221
        %223 = vperm.xlu0 %222, %v212
        %v224 = vpop.permute.xlu0 %223
        %v225 = vperm.slane %v182, 3
        %v226 = vlaneseq
        %v227 = vshrl.u32 %v226, 7
        %229 = vset.pattern.permute.xlu0 %v227
        %230 = vperm.xlu0 %229, %v225
        %v231 = vpop.permute.xlu0 %230
        %v232 = vlaneseq
        %v233 = vshrl.u32 %v232, 7
        %v234 = vadd.s32 %v233, 8
        %235 = vset.pattern.permute.xlu0 %v234
        %236 = vperm.xlu0 %235, %v225
        %v237 = vpop.permute.xlu0 %236
        %v238 = vperm.slane %v182, 4
        %v239 = vlaneseq
        %v240 = vshrl.u32 %v239, 7
        %242 = vset.pattern.permute.xlu0 %v240
        %243 = vperm.xlu0 %242, %v238
        %v244 = vpop.permute.xlu0 %243
        %v245 = vlaneseq
        %v246 = vshrl.u32 %v245, 7
        %v247 = vadd.s32 %v246, 8
        %248 = vset.pattern.permute.xlu0 %v247
        %249 = vperm.xlu0 %248, %v238
        %v250 = vpop.permute.xlu0 %249
        %v251 = vperm.slane %v182, 5
        %v252 = vlaneseq
        %v253 = vshrl.u32 %v252, 7
        %255 = vset.pattern.permute.xlu0 %v253
        %256 = vperm.xlu0 %255, %v251
        %v257 = vpop.permute.xlu0 %256
        %v258 = vlaneseq
        %v259 = vshrl.u32 %v258, 7
        %v260 = vadd.s32 %v259, 8
        %261 = vset.pattern.permute.xlu0 %v260
        %262 = vperm.xlu0 %261, %v251
        %v263 = vpop.permute.xlu0 %262
        %v264 = vperm.slane %v182, 6
        %v265 = vlaneseq
        %v266 = vshrl.u32 %v265, 7
        %268 = vset.pattern.permute.xlu0 %v266
        %269 = vperm.xlu0 %268, %v264
        %v270 = vpop.permute.xlu0 %269
        %v271 = vlaneseq
        %v272 = vshrl.u32 %v271, 7
        %v273 = vadd.s32 %v272, 8
        %274 = vset.pattern.permute.xlu0 %v273
        %275 = vperm.xlu0 %274, %v264
        %v276 = vpop.permute.xlu0 %275
        %v277 = vperm.slane %v182, 7
        %v278 = vlaneseq
        %v279 = vshrl.u32 %v278, 7
        %281 = vset.pattern.permute.xlu0 %v279
        %282 = vperm.xlu0 %281, %v277
        %v283 = vpop.permute.xlu0 %282
        %v284 = vlaneseq
        %v285 = vshrl.u32 %v284, 7
        %v286 = vadd.s32 %v285, 8
        %287 = vset.pattern.permute.xlu0 %v286
        %288 = vperm.xlu0 %287, %v277
        %v289 = vpop.permute.xlu0 %288
        %v290 = vperm.slane %v183, 0
        %v291 = vlaneseq
        %v292 = vshrl.u32 %v291, 7
        %294 = vset.pattern.permute.xlu0 %v292
        %295 = vperm.xlu0 %294, %v290
        %v296 = vpop.permute.xlu0 %295
        %v297 = vlaneseq
        %v298 = vshrl.u32 %v297, 7
        %v299 = vadd.s32 %v298, 8
        %300 = vset.pattern.permute.xlu0 %v299
        %301 = vperm.xlu0 %300, %v290
        %v302 = vpop.permute.xlu0 %301
        %v303 = vperm.slane %v183, 1
        %v304 = vlaneseq
        %v305 = vshrl.u32 %v304, 7
        %307 = vset.pattern.permute.xlu0 %v305
        %308 = vperm.xlu0 %307, %v303
        %v309 = vpop.permute.xlu0 %308
        %v310 = vlaneseq
        %v311 = vshrl.u32 %v310, 7
        %v312 = vadd.s32 %v311, 8
        %313 = vset.pattern.permute.xlu0 %v312
        %314 = vperm.xlu0 %313, %v303
        %v315 = vpop.permute.xlu0 %314
        %v316 = vperm.slane %v183, 2
        %v317 = vlaneseq
        %v318 = vshrl.u32 %v317, 7
        %320 = vset.pattern.permute.xlu0 %v318
        %321 = vperm.xlu0 %320, %v316
        %v322 = vpop.permute.xlu0 %321
        %v323 = vlaneseq
        %v324 = vshrl.u32 %v323, 7
        %v325 = vadd.s32 %v324, 8
        %326 = vset.pattern.permute.xlu0 %v325
        %327 = vperm.xlu0 %326, %v316
        %v328 = vpop.permute.xlu0 %327
        %v329 = vperm.slane %v183, 3
        %v330 = vlaneseq
        %v331 = vshrl.u32 %v330, 7
        %333 = vset.pattern.permute.xlu0 %v331
        %334 = vperm.xlu0 %333, %v329
        %v335 = vpop.permute.xlu0 %334
        %v336 = vlaneseq
        %v337 = vshrl.u32 %v336, 7
        %v338 = vadd.s32 %v337, 8
        %339 = vset.pattern.permute.xlu0 %v338
        %340 = vperm.xlu0 %339, %v329
        %v341 = vpop.permute.xlu0 %340
        %v342 = vperm.slane %v183, 4
        %v343 = vlaneseq
        %v344 = vshrl.u32 %v343, 7
        %346 = vset.pattern.permute.xlu0 %v344
        %347 = vperm.xlu0 %346, %v342
        %v348 = vpop.permute.xlu0 %347
        %v349 = vlaneseq
        %v350 = vshrl.u32 %v349, 7
        %v351 = vadd.s32 %v350, 8
        %352 = vset.pattern.permute.xlu0 %v351
        %353 = vperm.xlu0 %352, %v342
        %v354 = vpop.permute.xlu0 %353
        %v355 = vperm.slane %v183, 5
        %v356 = vlaneseq
        %v357 = vshrl.u32 %v356, 7
        %359 = vset.pattern.permute.xlu0 %v357
        %360 = vperm.xlu0 %359, %v355
        %v361 = vpop.permute.xlu0 %360
        %v362 = vlaneseq
        %v363 = vshrl.u32 %v362, 7
        %v364 = vadd.s32 %v363, 8
        %365 = vset.pattern.permute.xlu0 %v364
        %366 = vperm.xlu0 %365, %v355
        %v367 = vpop.permute.xlu0 %366
        %v368 = vperm.slane %v183, 6
        %v369 = vlaneseq
        %v370 = vshrl.u32 %v369, 7
        %372 = vset.pattern.permute.xlu0 %v370
        %373 = vperm.xlu0 %372, %v368
        %v374 = vpop.permute.xlu0 %373
        %v375 = vlaneseq
        %v376 = vshrl.u32 %v375, 7
        %v377 = vadd.s32 %v376, 8
        %378 = vset.pattern.permute.xlu0 %v377
        %379 = vperm.xlu0 %378, %v368
        %v380 = vpop.permute.xlu0 %379
        %v381 = vperm.slane %v183, 7
        %v382 = vlaneseq
        %v383 = vshrl.u32 %v382, 7
        %385 = vset.pattern.permute.xlu0 %v383
        %386 = vperm.xlu0 %385, %v381
        %v387 = vpop.permute.xlu0 %386
        %v388 = vlaneseq
        %v389 = vshrl.u32 %v388, 7
        %v390 = vadd.s32 %v389, 8
        %391 = vset.pattern.permute.xlu0 %v390
        %392 = vperm.xlu0 %391, %v381
        %v393 = vpop.permute.xlu0 %392
        %vm394 = vcmask 7168
        %v395 = vsel %vm394, %v192, %v296
        %v396 = vsel %vm394, %v198, %v302
        %v397 = vsel %vm394, %v205, %v309
        %v398 = vsel %vm394, %v211, %v315
        %v399 = vsel %vm394, %v218, %v322
        %v400 = vsel %vm394, %v224, %v328
        %v401 = vsel %vm394, %v231, %v335
        %v402 = vsel %vm394, %v237, %v341
        %v403 = vsel %vm394, %v244, %v348
        %v404 = vsel %vm394, %v250, %v354
        %v405 = vsel %vm394, %v257, %v361
        %v406 = vsel %vm394, %v263, %v367
        %v407 = vsel %vm394, %v270, %v374
        %v408 = vsel %vm394, %v276, %v380
        %v409 = vsel %vm394, %v283, %v387
        %v410 = vsel %vm394, %v289, %v393
        %v411 = vperm.slane %v184, 0
        %v412 = vlaneseq
        %v413 = vshrl.u32 %v412, 7
        %415 = vset.pattern.permute.xlu0 %v413
        %416 = vperm.xlu0 %415, %v411
        %v417 = vpop.permute.xlu0 %416
        %v418 = vlaneseq
        %v419 = vshrl.u32 %v418, 7
        %v420 = vadd.s32 %v419, 8
        %421 = vset.pattern.permute.xlu0 %v420
        %422 = vperm.xlu0 %421, %v411
        %v423 = vpop.permute.xlu0 %422
        %v424 = vperm.slane %v184, 1
        %v425 = vlaneseq
        %v426 = vshrl.u32 %v425, 7
        %428 = vset.pattern.permute.xlu0 %v426
        %429 = vperm.xlu0 %428, %v424
        %v430 = vpop.permute.xlu0 %429
        %v431 = vlaneseq
        %v432 = vshrl.u32 %v431, 7
        %v433 = vadd.s32 %v432, 8
        %434 = vset.pattern.permute.xlu0 %v433
        %435 = vperm.xlu0 %434, %v424
        %v436 = vpop.permute.xlu0 %435
        %v437 = vperm.slane %v184, 2
        %v438 = vlaneseq
        %v439 = vshrl.u32 %v438, 7
        %441 = vset.pattern.permute.xlu0 %v439
        %442 = vperm.xlu0 %441, %v437
        %v443 = vpop.permute.xlu0 %442
        %v444 = vlaneseq
        %v445 = vshrl.u32 %v444, 7
        %v446 = vadd.s32 %v445, 8
        %447 = vset.pattern.permute.xlu0 %v446
        %448 = vperm.xlu0 %447, %v437
        %v449 = vpop.permute.xlu0 %448
        %v450 = vperm.slane %v184, 3
        %v451 = vlaneseq
        %v452 = vshrl.u32 %v451, 7
        %454 = vset.pattern.permute.xlu0 %v452
        %455 = vperm.xlu0 %454, %v450
        %v456 = vpop.permute.xlu0 %455
        %v457 = vlaneseq
        %v458 = vshrl.u32 %v457, 7
        %v459 = vadd.s32 %v458, 8
        %460 = vset.pattern.permute.xlu0 %v459
        %461 = vperm.xlu0 %460, %v450
        %v462 = vpop.permute.xlu0 %461
        %v463 = vperm.slane %v184, 4
        %v464 = vlaneseq
        %v465 = vshrl.u32 %v464, 7
        %467 = vset.pattern.permute.xlu0 %v465
        %468 = vperm.xlu0 %467, %v463
        %v469 = vpop.permute.xlu0 %468
        %v470 = vlaneseq
        %v471 = vshrl.u32 %v470, 7
        %v472 = vadd.s32 %v471, 8
        %473 = vset.pattern.permute.xlu0 %v472
        %474 = vperm.xlu0 %473, %v463
        %v475 = vpop.permute.xlu0 %474
        %v476 = vperm.slane %v184, 5
        %v477 = vlaneseq
        %v478 = vshrl.u32 %v477, 7
        %480 = vset.pattern.permute.xlu0 %v478
        %481 = vperm.xlu0 %480, %v476
        %v482 = vpop.permute.xlu0 %481
        %v483 = vlaneseq
        %v484 = vshrl.u32 %v483, 7
        %v485 = vadd.s32 %v484, 8
        %486 = vset.pattern.permute.xlu0 %v485
        %487 = vperm.xlu0 %486, %v476
        %v488 = vpop.permute.xlu0 %487
        %v489 = vperm.slane %v184, 6
        %v490 = vlaneseq
        %v491 = vshrl.u32 %v490, 7
        %493 = vset.pattern.permute.xlu0 %v491
        %494 = vperm.xlu0 %493, %v489
        %v495 = vpop.permute.xlu0 %494
        %v496 = vlaneseq
        %v497 = vshrl.u32 %v496, 7
        %v498 = vadd.s32 %v497, 8
        %499 = vset.pattern.permute.xlu0 %v498
        %500 = vperm.xlu0 %499, %v489
        %v501 = vpop.permute.xlu0 %500
        %v502 = vperm.slane %v184, 7
        %v503 = vlaneseq
        %v504 = vshrl.u32 %v503, 7
        %506 = vset.pattern.permute.xlu0 %v504
        %507 = vperm.xlu0 %506, %v502
        %v508 = vpop.permute.xlu0 %507
        %v509 = vlaneseq
        %v510 = vshrl.u32 %v509, 7
        %v511 = vadd.s32 %v510, 8
        %512 = vset.pattern.permute.xlu0 %v511
        %513 = vperm.xlu0 %512, %v502
        %v514 = vpop.permute.xlu0 %513
        %v515 = vperm.slane %v185, 0
        %v516 = vlaneseq
        %v517 = vshrl.u32 %v516, 7
        %519 = vset.pattern.permute.xlu0 %v517
        %520 = vperm.xlu0 %519, %v515
        %v521 = vpop.permute.xlu0 %520
        %v522 = vlaneseq
        %v523 = vshrl.u32 %v522, 7
        %v524 = vadd.s32 %v523, 8
        %525 = vset.pattern.permute.xlu0 %v524
        %526 = vperm.xlu0 %525, %v515
        %v527 = vpop.permute.xlu0 %526
        %v528 = vperm.slane %v185, 1
        %v529 = vlaneseq
        %v530 = vshrl.u32 %v529, 7
        %532 = vset.pattern.permute.xlu0 %v530
        %533 = vperm.xlu0 %532, %v528
        %v534 = vpop.permute.xlu0 %533
        %v535 = vlaneseq
        %v536 = vshrl.u32 %v535, 7
        %v537 = vadd.s32 %v536, 8
        %538 = vset.pattern.permute.xlu0 %v537
        %539 = vperm.xlu0 %538, %v528
        %v540 = vpop.permute.xlu0 %539
        %v541 = vperm.slane %v185, 2
        %v542 = vlaneseq
        %v543 = vshrl.u32 %v542, 7
        %545 = vset.pattern.permute.xlu0 %v543
        %546 = vperm.xlu0 %545, %v541
        %v547 = vpop.permute.xlu0 %546
        %v548 = vlaneseq
        %v549 = vshrl.u32 %v548, 7
        %v550 = vadd.s32 %v549, 8
        %551 = vset.pattern.permute.xlu0 %v550
        %552 = vperm.xlu0 %551, %v541
        %v553 = vpop.permute.xlu0 %552
        %v554 = vperm.slane %v185, 3
        %v555 = vlaneseq
        %v556 = vshrl.u32 %v555, 7
        %558 = vset.pattern.permute.xlu0 %v556
        %559 = vperm.xlu0 %558, %v554
        %v560 = vpop.permute.xlu0 %559
        %v561 = vlaneseq
        %v562 = vshrl.u32 %v561, 7
        %v563 = vadd.s32 %v562, 8
        %564 = vset.pattern.permute.xlu0 %v563
        %565 = vperm.xlu0 %564, %v554
        %v566 = vpop.permute.xlu0 %565
        %v567 = vperm.slane %v185, 4
        %v568 = vlaneseq
        %v569 = vshrl.u32 %v568, 7
        %571 = vset.pattern.permute.xlu0 %v569
        %572 = vperm.xlu0 %571, %v567
        %v573 = vpop.permute.xlu0 %572
        %v574 = vlaneseq
        %v575 = vshrl.u32 %v574, 7
        %v576 = vadd.s32 %v575, 8
        %577 = vset.pattern.permute.xlu0 %v576
        %578 = vperm.xlu0 %577, %v567
        %v579 = vpop.permute.xlu0 %578
        %v580 = vperm.slane %v185, 5
        %v581 = vlaneseq
        %v582 = vshrl.u32 %v581, 7
        %584 = vset.pattern.permute.xlu0 %v582
        %585 = vperm.xlu0 %584, %v580
        %v586 = vpop.permute.xlu0 %585
        %v587 = vlaneseq
        %v588 = vshrl.u32 %v587, 7
        %v589 = vadd.s32 %v588, 8
        %590 = vset.pattern.permute.xlu0 %v589
        %591 = vperm.xlu0 %590, %v580
        %v592 = vpop.permute.xlu0 %591
        %v593 = vperm.slane %v185, 6
        %v594 = vlaneseq
        %v595 = vshrl.u32 %v594, 7
        %597 = vset.pattern.permute.xlu0 %v595
        %598 = vperm.xlu0 %597, %v593
        %v599 = vpop.permute.xlu0 %598
        %v600 = vlaneseq
        %v601 = vshrl.u32 %v600, 7
        %v602 = vadd.s32 %v601, 8
        %603 = vset.pattern.permute.xlu0 %v602
        %604 = vperm.xlu0 %603, %v593
        %v605 = vpop.permute.xlu0 %604
        %v606 = vperm.slane %v185, 7
        %v607 = vlaneseq
        %v608 = vshrl.u32 %v607, 7
        %610 = vset.pattern.permute.xlu0 %v608
        %611 = vperm.xlu0 %610, %v606
        %v612 = vpop.permute.xlu0 %611
        %v613 = vlaneseq
        %v614 = vshrl.u32 %v613, 7
        %v615 = vadd.s32 %v614, 8
        %616 = vset.pattern.permute.xlu0 %v615
        %617 = vperm.xlu0 %616, %v606
        %v618 = vpop.permute.xlu0 %617
        %v619 = vsel %vm394, %v417, %v521
        %v620 = vsel %vm394, %v423, %v527
        %v621 = vsel %vm394, %v430, %v534
        %v622 = vsel %vm394, %v436, %v540
        %v623 = vsel %vm394, %v443, %v547
        %v624 = vsel %vm394, %v449, %v553
        %v625 = vsel %vm394, %v456, %v560
        %v626 = vsel %vm394, %v462, %v566
        %v627 = vsel %vm394, %v469, %v573
        %v628 = vsel %vm394, %v475, %v579
        %v629 = vsel %vm394, %v482, %v586
        %v630 = vsel %vm394, %v488, %v592
        %v631 = vsel %vm394, %v495, %v599
        %v632 = vsel %vm394, %v501, %v605
        %v633 = vsel %vm394, %v508, %v612
        %v634 = vsel %vm394, %v514, %v618
        %v635 = vrot.slane %v399, 4
        %vm636 = vcmask 1047556
        %v637 = vsel %vm636, %v635, %v395
        %v638 = vrot.slane %v395, 4
        %v639 = vsel %vm636, %v399, %v638
        %v641 = vunpack.c.l.s4 1983009808
        %v642 = vunpack.c.0.s8 %v641
        %v643 = vperm.slane %v637, %v642
        %v645 = vunpack.c.l.s4 1983009808
        %v646 = vunpack.c.0.s8 %v645
        %v647 = vperm.slane %v639, %v646
        %v648 = vrot.slane %v401, 4
        %v649 = vsel %vm636, %v648, %v397
        %v650 = vrot.slane %v397, 4
        %v651 = vsel %vm636, %v401, %v650
        %v653 = vunpack.c.l.s4 1983009808
        %v654 = vunpack.c.0.s8 %v653
        %v655 = vperm.slane %v649, %v654
        %v657 = vunpack.c.l.s4 1983009808
        %v658 = vunpack.c.0.s8 %v657
        %v659 = vperm.slane %v651, %v658
        %v660 = vrot.slane %v407, 4
        %v661 = vsel %vm636, %v660, %v403
        %v662 = vrot.slane %v403, 4
        %v663 = vsel %vm636, %v407, %v662
        %v665 = vunpack.c.l.s4 1983009808
        %v666 = vunpack.c.0.s8 %v665
        %v667 = vperm.slane %v661, %v666
        %v669 = vunpack.c.l.s4 1983009808
        %v670 = vunpack.c.0.s8 %v669
        %v671 = vperm.slane %v663, %v670
        %v672 = vrot.slane %v409, 4
        %v673 = vsel %vm636, %v672, %v405
        %v674 = vrot.slane %v405, 4
        %v675 = vsel %vm636, %v409, %v674
        %v677 = vunpack.c.l.s4 1983009808
        %v678 = vunpack.c.0.s8 %v677
        %v679 = vperm.slane %v673, %v678
        %v681 = vunpack.c.l.s4 1983009808
        %v682 = vunpack.c.0.s8 %v681
        %v683 = vperm.slane %v675, %v682
        %v684 = vrot.slane %v655, 4
        %v685 = vsel %vm636, %v684, %v643
        %v686 = vrot.slane %v643, 4
        %v687 = vsel %vm636, %v655, %v686
        %v689 = vunpack.c.l.s4 1934713408
        %v690 = vunpack.c.0.s8 %v689
        %v691 = vperm.slane %v685, %v690
        %v693 = vunpack.c.l.s4 1934713408
        %v694 = vunpack.c.0.s8 %v693
        %v695 = vperm.slane %v687, %v694
        %v696 = vrot.slane %v659, 4
        %v697 = vsel %vm636, %v696, %v647
        %v698 = vrot.slane %v647, 4
        %v699 = vsel %vm636, %v659, %v698
        %v701 = vunpack.c.l.s4 1934713408
        %v702 = vunpack.c.0.s8 %v701
        %v703 = vperm.slane %v697, %v702
        %v705 = vunpack.c.l.s4 1934713408
        %v706 = vunpack.c.0.s8 %v705
        %v707 = vperm.slane %v699, %v706
        %v708 = vrot.slane %v679, 4
        %v709 = vsel %vm636, %v708, %v667
        %v710 = vrot.slane %v667, 4
        %v711 = vsel %vm636, %v679, %v710
        %v713 = vunpack.c.l.s4 1934713408
        %v714 = vunpack.c.0.s8 %v713
        %v715 = vperm.slane %v709, %v714
        %v717 = vunpack.c.l.s4 1934713408
        %v718 = vunpack.c.0.s8 %v717
        %v719 = vperm.slane %v711, %v718
        %v720 = vrot.slane %v683, 4
        %v721 = vsel %vm636, %v720, %v671
        %v722 = vrot.slane %v671, 4
        %v723 = vsel %vm636, %v683, %v722
        %v725 = vunpack.c.l.s4 1934713408
        %v726 = vunpack.c.0.s8 %v725
        %v727 = vperm.slane %v721, %v726
        %v729 = vunpack.c.l.s4 1934713408
        %v730 = vunpack.c.0.s8 %v729
        %v731 = vperm.slane %v723, %v730
        %v732 = vrot.slane %v715, 4
        %v733 = vsel %vm636, %v732, %v691
        %v734 = vrot.slane %v691, 4
        %v735 = vsel %vm636, %v715, %v734
        %v736 = vrot.slane %v719, 4
        %v737 = vsel %vm636, %v736, %v695
        %v738 = vrot.slane %v695, 4
        %v739 = vsel %vm636, %v719, %v738
        %v740 = vrot.slane %v727, 4
        %v741 = vsel %vm636, %v740, %v703
        %v742 = vrot.slane %v703, 4
        %v743 = vsel %vm636, %v727, %v742
        %v744 = vrot.slane %v731, 4
        %v745 = vsel %vm636, %v744, %v707
        %v746 = vrot.slane %v707, 4
        %v747 = vsel %vm636, %v731, %v746
        %v748 = vrot.slane %v400, 4
        %v749 = vsel %vm636, %v748, %v396
        %v750 = vrot.slane %v396, 4
        %v751 = vsel %vm636, %v400, %v750
        %v753 = vunpack.c.l.s4 1983009808
        %v754 = vunpack.c.0.s8 %v753
        %v755 = vperm.slane %v749, %v754
        %v757 = vunpack.c.l.s4 1983009808
        %v758 = vunpack.c.0.s8 %v757
        %v759 = vperm.slane %v751, %v758
        %v760 = vrot.slane %v402, 4
        %v761 = vsel %vm636, %v760, %v398
        %v762 = vrot.slane %v398, 4
        %v763 = vsel %vm636, %v402, %v762
        %v765 = vunpack.c.l.s4 1983009808
        %v766 = vunpack.c.0.s8 %v765
        %v767 = vperm.slane %v761, %v766
        %v769 = vunpack.c.l.s4 1983009808
        %v770 = vunpack.c.0.s8 %v769
        %v771 = vperm.slane %v763, %v770
        %v772 = vrot.slane %v408, 4
        %v773 = vsel %vm636, %v772, %v404
        %v774 = vrot.slane %v404, 4
        %v775 = vsel %vm636, %v408, %v774
        %v777 = vunpack.c.l.s4 1983009808
        %v778 = vunpack.c.0.s8 %v777
        %v779 = vperm.slane %v773, %v778
        %v781 = vunpack.c.l.s4 1983009808
        %v782 = vunpack.c.0.s8 %v781
        %v783 = vperm.slane %v775, %v782
        %v784 = vrot.slane %v410, 4
        %v785 = vsel %vm636, %v784, %v406
        %v786 = vrot.slane %v406, 4
        %v787 = vsel %vm636, %v410, %v786
        %v789 = vunpack.c.l.s4 1983009808
        %v790 = vunpack.c.0.s8 %v789
        %v791 = vperm.slane %v785, %v790
        %v793 = vunpack.c.l.s4 1983009808
        %v794 = vunpack.c.0.s8 %v793
        %v795 = vperm.slane %v787, %v794
        %v796 = vrot.slane %v767, 4
        %v797 = vsel %vm636, %v796, %v755
        %v798 = vrot.slane %v755, 4
        %v799 = vsel %vm636, %v767, %v798
        %v801 = vunpack.c.l.s4 1934713408
        %v802 = vunpack.c.0.s8 %v801
        %v803 = vperm.slane %v797, %v802
        %v805 = vunpack.c.l.s4 1934713408
        %v806 = vunpack.c.0.s8 %v805
        %v807 = vperm.slane %v799, %v806
        %v808 = vrot.slane %v771, 4
        %v809 = vsel %vm636, %v808, %v759
        %v810 = vrot.slane %v759, 4
        %v811 = vsel %vm636, %v771, %v810
        %v813 = vunpack.c.l.s4 1934713408
        %v814 = vunpack.c.0.s8 %v813
        %v815 = vperm.slane %v809, %v814
        %v817 = vunpack.c.l.s4 1934713408
        %v818 = vunpack.c.0.s8 %v817
        %v819 = vperm.slane %v811, %v818
        %v820 = vrot.slane %v791, 4
        %v821 = vsel %vm636, %v820, %v779
        %v822 = vrot.slane %v779, 4
        %v823 = vsel %vm636, %v791, %v822
        %v825 = vunpack.c.l.s4 1934713408
        %v826 = vunpack.c.0.s8 %v825
        %v827 = vperm.slane %v821, %v826
        %v829 = vunpack.c.l.s4 1934713408
        %v830 = vunpack.c.0.s8 %v829
        %v831 = vperm.slane %v823, %v830
        %v832 = vrot.slane %v795, 4
        %v833 = vsel %vm636, %v832, %v783
        %v834 = vrot.slane %v783, 4
        %v835 = vsel %vm636, %v795, %v834
        %v837 = vunpack.c.l.s4 1934713408
        %v838 = vunpack.c.0.s8 %v837
        %v839 = vperm.slane %v833, %v838
        %v841 = vunpack.c.l.s4 1934713408
        %v842 = vunpack.c.0.s8 %v841
        %v843 = vperm.slane %v835, %v842
        %v844 = vrot.slane %v827, 4
        %v845 = vsel %vm636, %v844, %v803
        %v846 = vrot.slane %v803, 4
        %v847 = vsel %vm636, %v827, %v846
        %v848 = vrot.slane %v831, 4
        %v849 = vsel %vm636, %v848, %v807
        %v850 = vrot.slane %v807, 4
        %v851 = vsel %vm636, %v831, %v850
        %v852 = vrot.slane %v839, 4
        %v853 = vsel %vm636, %v852, %v815
        %v854 = vrot.slane %v815, 4
        %v855 = vsel %vm636, %v839, %v854
        %v856 = vrot.slane %v843, 4
        %v857 = vsel %vm636, %v856, %v819
        %v858 = vrot.slane %v819, 4
        %v859 = vsel %vm636, %v843, %v858
        %861 = vrot.lane.b32.xlu0 %v735, 2
        %v862 = vpop.permute.xlu0 %861
        %865 = vrot.lane.b32.xlu0 %v737, 4
        %v866 = vpop.permute.xlu0 %865
        %869 = vrot.lane.b32.xlu0 %v739, 6
        %v870 = vpop.permute.xlu0 %869
        %873 = vrot.lane.b32.xlu0 %v741, 8
        %v874 = vpop.permute.xlu0 %873
        %877 = vrot.lane.b32.xlu0 %v743, 10
        %v878 = vpop.permute.xlu0 %877
        %881 = vrot.lane.b32.xlu0 %v745, 12
        %v882 = vpop.permute.xlu0 %881
        %885 = vrot.lane.b32.xlu0 %v747, 14
        %v886 = vpop.permute.xlu0 %885
        %889 = vrot.lane.b32.xlu0 %v845, 16
        %v890 = vpop.permute.xlu0 %889
        %893 = vrot.lane.b32.xlu0 %v847, 18
        %v894 = vpop.permute.xlu0 %893
        %897 = vrot.lane.b32.xlu0 %v849, 20
        %v898 = vpop.permute.xlu0 %897
        %901 = vrot.lane.b32.xlu0 %v851, 22
        %v902 = vpop.permute.xlu0 %901
        %905 = vrot.lane.b32.xlu0 %v853, 24
        %v906 = vpop.permute.xlu0 %905
        %909 = vrot.lane.b32.xlu0 %v855, 26
        %v910 = vpop.permute.xlu0 %909
        %913 = vrot.lane.b32.xlu0 %v857, 28
        %v914 = vpop.permute.xlu0 %913
        %917 = vrot.lane.b32.xlu0 %v859, 30
        %v918 = vpop.permute.xlu0 %917
        %vm920 = vcmask 15360
        %v921 = vsel %vm920, %v733, %v862
        %vm922 = vcmask 31744
        %v923 = vsel %vm922, %v921, %v866
        %vm924 = vcmask 48128
        %v925 = vsel %vm924, %v923, %v870
        %vm926 = vcmask 64512
        %v927 = vsel %vm926, %v925, %v874
        %vm928 = vcmask 80896
        %v929 = vsel %vm928, %v927, %v878
        %vm930 = vcmask 97280
        %v931 = vsel %vm930, %v929, %v882
        %vm932 = vcmask 113664
        %v933 = vsel %vm932, %v931, %v886
        %vm934 = vcmask 130048
        %v935 = vsel %vm934, %v933, %v890
        %vm936 = vcmask 146432
        %v937 = vsel %vm936, %v935, %v894
        %vm938 = vcmask 162816
        %v939 = vsel %vm938, %v937, %v898
        %vm940 = vcmask 179200
        %v941 = vsel %vm940, %v939, %v902
        %vm942 = vcmask 195584
        %v943 = vsel %vm942, %v941, %v906
        %vm944 = vcmask 211968
        %v945 = vsel %vm944, %v943, %v910
        %vm946 = vcmask 228352
        %v947 = vsel %vm946, %v945, %v914
        %vm948 = vcmask 244736
        %v949 = vsel %vm948, %v947, %v918
        %vm950 = vcmask 261120
        %951 = vst.msk [vmem:[%s166] sm:$0xff] %vm950, %v949
        %v952 = vrot.slane %v623, 4
        %v953 = vsel %vm636, %v952, %v619
        %v954 = vrot.slane %v619, 4
        %v955 = vsel %vm636, %v623, %v954
        %v957 = vunpack.c.l.s4 1983009808
        %v958 = vunpack.c.0.s8 %v957
        %v959 = vperm.slane %v953, %v958
        %v961 = vunpack.c.l.s4 1983009808
        %v962 = vunpack.c.0.s8 %v961
        %v963 = vperm.slane %v955, %v962
        %v964 = vrot.slane %v625, 4
        %v965 = vsel %vm636, %v964, %v621
        %v966 = vrot.slane %v621, 4
        %v967 = vsel %vm636, %v625, %v966
        %v969 = vunpack.c.l.s4 1983009808
        %v970 = vunpack.c.0.s8 %v969
        %v971 = vperm.slane %v965, %v970
        %v973 = vunpack.c.l.s4 1983009808
        %v974 = vunpack.c.0.s8 %v973
        %v975 = vperm.slane %v967, %v974
        %v976 = vrot.slane %v631, 4
        %v977 = vsel %vm636, %v976, %v627
        %v978 = vrot.slane %v627, 4
        %v979 = vsel %vm636, %v631, %v978
        %v981 = vunpack.c.l.s4 1983009808
        %v982 = vunpack.c.0.s8 %v981
        %v983 = vperm.slane %v977, %v982
        %v985 = vunpack.c.l.s4 1983009808
        %v986 = vunpack.c.0.s8 %v985
        %v987 = vperm.slane %v979, %v986
        %v988 = vrot.slane %v633, 4
        %v989 = vsel %vm636, %v988, %v629
        %v990 = vrot.slane %v629, 4
        %v991 = vsel %vm636, %v633, %v990
        %v993 = vunpack.c.l.s4 1983009808
        %v994 = vunpack.c.0.s8 %v993
        %v995 = vperm.slane %v989, %v994
        %v997 = vunpack.c.l.s4 1983009808
        %v998 = vunpack.c.0.s8 %v997
        %v999 = vperm.slane %v991, %v998
        %v1000 = vrot.slane %v971, 4
        %v1001 = vsel %vm636, %v1000, %v959
        %v1002 = vrot.slane %v959, 4
        %v1003 = vsel %vm636, %v971, %v1002
        %v1005 = vunpack.c.l.s4 1934713408
        %v1006 = vunpack.c.0.s8 %v1005
        %v1007 = vperm.slane %v1001, %v1006
        %v1009 = vunpack.c.l.s4 1934713408
        %v1010 = vunpack.c.0.s8 %v1009
        %v1011 = vperm.slane %v1003, %v1010
        %v1012 = vrot.slane %v975, 4
        %v1013 = vsel %vm636, %v1012, %v963
        %v1014 = vrot.slane %v963, 4
        %v1015 = vsel %vm636, %v975, %v1014
        %v1017 = vunpack.c.l.s4 1934713408
        %v1018 = vunpack.c.0.s8 %v1017
        %v1019 = vperm.slane %v1013, %v1018
        %v1021 = vunpack.c.l.s4 1934713408
        %v1022 = vunpack.c.0.s8 %v1021
        %v1023 = vperm.slane %v1015, %v1022
        %v1024 = vrot.slane %v995, 4
        %v1025 = vsel %vm636, %v1024, %v983
        %v1026 = vrot.slane %v983, 4
        %v1027 = vsel %vm636, %v995, %v1026
        %v1029 = vunpack.c.l.s4 1934713408
        %v1030 = vunpack.c.0.s8 %v1029
        %v1031 = vperm.slane %v1025, %v1030
        %v1033 = vunpack.c.l.s4 1934713408
        %v1034 = vunpack.c.0.s8 %v1033
        %v1035 = vperm.slane %v1027, %v1034
        %v1036 = vrot.slane %v999, 4
        %v1037 = vsel %vm636, %v1036, %v987
        %v1038 = vrot.slane %v987, 4
        %v1039 = vsel %vm636, %v999, %v1038
        %v1041 = vunpack.c.l.s4 1934713408
        %v1042 = vunpack.c.0.s8 %v1041
        %v1043 = vperm.slane %v1037, %v1042
        %v1045 = vunpack.c.l.s4 1934713408
        %v1046 = vunpack.c.0.s8 %v1045
        %v1047 = vperm.slane %v1039, %v1046
        %v1048 = vrot.slane %v1031, 4
        %v1049 = vsel %vm636, %v1048, %v1007
        %v1050 = vrot.slane %v1007, 4
        %v1051 = vsel %vm636, %v1031, %v1050
        %v1052 = vrot.slane %v1035, 4
        %v1053 = vsel %vm636, %v1052, %v1011
        %v1054 = vrot.slane %v1011, 4
        %v1055 = vsel %vm636, %v1035, %v1054
        %v1056 = vrot.slane %v1043, 4
        %v1057 = vsel %vm636, %v1056, %v1019
        %v1058 = vrot.slane %v1019, 4
        %v1059 = vsel %vm636, %v1043, %v1058
        %v1060 = vrot.slane %v1047, 4
        %v1061 = vsel %vm636, %v1060, %v1023
        %v1062 = vrot.slane %v1023, 4
        %v1063 = vsel %vm636, %v1047, %v1062
        %v1064 = vrot.slane %v624, 4
        %v1065 = vsel %vm636, %v1064, %v620
        %v1066 = vrot.slane %v620, 4
        %v1067 = vsel %vm636, %v624, %v1066
        %v1069 = vunpack.c.l.s4 1983009808
        %v1070 = vunpack.c.0.s8 %v1069
        %v1071 = vperm.slane %v1065, %v1070
        %v1073 = vunpack.c.l.s4 1983009808
        %v1074 = vunpack.c.0.s8 %v1073
        %v1075 = vperm.slane %v1067, %v1074
        %v1076 = vrot.slane %v626, 4
        %v1077 = vsel %vm636, %v1076, %v622
        %v1078 = vrot.slane %v622, 4
        %v1079 = vsel %vm636, %v626, %v1078
        %v1081 = vunpack.c.l.s4 1983009808
        %v1082 = vunpack.c.0.s8 %v1081
        %v1083 = vperm.slane %v1077, %v1082
        %v1085 = vunpack.c.l.s4 1983009808
        %v1086 = vunpack.c.0.s8 %v1085
        %v1087 = vperm.slane %v1079, %v1086
        %v1088 = vrot.slane %v632, 4
        %v1089 = vsel %vm636, %v1088, %v628
        %v1090 = vrot.slane %v628, 4
        %v1091 = vsel %vm636, %v632, %v1090
        %v1093 = vunpack.c.l.s4 1983009808
        %v1094 = vunpack.c.0.s8 %v1093
        %v1095 = vperm.slane %v1089, %v1094
        %v1097 = vunpack.c.l.s4 1983009808
        %v1098 = vunpack.c.0.s8 %v1097
        %v1099 = vperm.slane %v1091, %v1098
        %v1100 = vrot.slane %v634, 4
        %v1101 = vsel %vm636, %v1100, %v630
        %v1102 = vrot.slane %v630, 4
        %v1103 = vsel %vm636, %v634, %v1102
        %v1105 = vunpack.c.l.s4 1983009808
        %v1106 = vunpack.c.0.s8 %v1105
        %v1107 = vperm.slane %v1101, %v1106
        %v1109 = vunpack.c.l.s4 1983009808
        %v1110 = vunpack.c.0.s8 %v1109
        %v1111 = vperm.slane %v1103, %v1110
        %v1112 = vrot.slane %v1083, 4
        %v1113 = vsel %vm636, %v1112, %v1071
        %v1114 = vrot.slane %v1071, 4
        %v1115 = vsel %vm636, %v1083, %v1114
        %v1117 = vunpack.c.l.s4 1934713408
        %v1118 = vunpack.c.0.s8 %v1117
        %v1119 = vperm.slane %v1113, %v1118
        %v1121 = vunpack.c.l.s4 1934713408
        %v1122 = vunpack.c.0.s8 %v1121
        %v1123 = vperm.slane %v1115, %v1122
        %v1124 = vrot.slane %v1087, 4
        %v1125 = vsel %vm636, %v1124, %v1075
        %v1126 = vrot.slane %v1075, 4
        %v1127 = vsel %vm636, %v1087, %v1126
        %v1129 = vunpack.c.l.s4 1934713408
        %v1130 = vunpack.c.0.s8 %v1129
        %v1131 = vperm.slane %v1125, %v1130
        %v1133 = vunpack.c.l.s4 1934713408
        %v1134 = vunpack.c.0.s8 %v1133
        %v1135 = vperm.slane %v1127, %v1134
        %v1136 = vrot.slane %v1107, 4
        %v1137 = vsel %vm636, %v1136, %v1095
        %v1138 = vrot.slane %v1095, 4
        %v1139 = vsel %vm636, %v1107, %v1138
        %v1141 = vunpack.c.l.s4 1934713408
        %v1142 = vunpack.c.0.s8 %v1141
        %v1143 = vperm.slane %v1137, %v1142
        %v1145 = vunpack.c.l.s4 1934713408
        %v1146 = vunpack.c.0.s8 %v1145
        %v1147 = vperm.slane %v1139, %v1146
        %v1148 = vrot.slane %v1111, 4
        %v1149 = vsel %vm636, %v1148, %v1099
        %v1150 = vrot.slane %v1099, 4
        %v1151 = vsel %vm636, %v1111, %v1150
        %v1153 = vunpack.c.l.s4 1934713408
        %v1154 = vunpack.c.0.s8 %v1153
        %v1155 = vperm.slane %v1149, %v1154
        %v1157 = vunpack.c.l.s4 1934713408
        %v1158 = vunpack.c.0.s8 %v1157
        %v1159 = vperm.slane %v1151, %v1158
        %v1160 = vrot.slane %v1143, 4
        %v1161 = vsel %vm636, %v1160, %v1119
        %v1162 = vrot.slane %v1119, 4
        %v1163 = vsel %vm636, %v1143, %v1162
        %v1164 = vrot.slane %v1147, 4
        %v1165 = vsel %vm636, %v1164, %v1123
        %v1166 = vrot.slane %v1123, 4
        %v1167 = vsel %vm636, %v1147, %v1166
        %v1168 = vrot.slane %v1155, 4
        %v1169 = vsel %vm636, %v1168, %v1131
        %v1170 = vrot.slane %v1131, 4
        %v1171 = vsel %vm636, %v1155, %v1170
        %v1172 = vrot.slane %v1159, 4
        %v1173 = vsel %vm636, %v1172, %v1135
        %v1174 = vrot.slane %v1135, 4
        %v1175 = vsel %vm636, %v1159, %v1174
        %1177 = vrot.lane.b32.xlu0 %v1051, 2
        %v1178 = vpop.permute.xlu0 %1177
        %1181 = vrot.lane.b32.xlu0 %v1053, 4
        %v1182 = vpop.permute.xlu0 %1181
        %1185 = vrot.lane.b32.xlu0 %v1055, 6
        %v1186 = vpop.permute.xlu0 %1185
        %1189 = vrot.lane.b32.xlu0 %v1057, 8
        %v1190 = vpop.permute.xlu0 %1189
        %1193 = vrot.lane.b32.xlu0 %v1059, 10
        %v1194 = vpop.permute.xlu0 %1193
        %1197 = vrot.lane.b32.xlu0 %v1061, 12
        %v1198 = vpop.permute.xlu0 %1197
        %1201 = vrot.lane.b32.xlu0 %v1063, 14
        %v1202 = vpop.permute.xlu0 %1201
        %1205 = vrot.lane.b32.xlu0 %v1161, 16
        %v1206 = vpop.permute.xlu0 %1205
        %1209 = vrot.lane.b32.xlu0 %v1163, 18
        %v1210 = vpop.permute.xlu0 %1209
        %1213 = vrot.lane.b32.xlu0 %v1165, 20
        %v1214 = vpop.permute.xlu0 %1213
        %1217 = vrot.lane.b32.xlu0 %v1167, 22
        %v1218 = vpop.permute.xlu0 %1217
        %1221 = vrot.lane.b32.xlu0 %v1169, 24
        %v1222 = vpop.permute.xlu0 %1221
        %1225 = vrot.lane.b32.xlu0 %v1171, 26
        %v1226 = vpop.permute.xlu0 %1225
        %1229 = vrot.lane.b32.xlu0 %v1173, 28
        %v1230 = vpop.permute.xlu0 %1229
        %1233 = vrot.lane.b32.xlu0 %v1175, 30
        %v1234 = vpop.permute.xlu0 %1233
        %v1236 = vsel %vm920, %v1049, %v1178
        %v1237 = vsel %vm922, %v1236, %v1182
        %v1238 = vsel %vm924, %v1237, %v1186
        %v1239 = vsel %vm926, %v1238, %v1190
        %v1240 = vsel %vm928, %v1239, %v1194
        %v1241 = vsel %vm930, %v1240, %v1198
        %v1242 = vsel %vm932, %v1241, %v1202
        %v1243 = vsel %vm934, %v1242, %v1206
        %v1244 = vsel %vm936, %v1243, %v1210
        %v1245 = vsel %vm938, %v1244, %v1214
        %v1246 = vsel %vm940, %v1245, %v1218
        %v1247 = vsel %vm942, %v1246, %v1222
        %v1248 = vsel %vm944, %v1247, %v1226
        %v1249 = vsel %vm946, %v1248, %v1230
        %v1250 = vsel %vm948, %v1249, %v1234
        %1252 = vrot.lane.b32.xlu0 %v1250, 32
        %v1253 = vpop.permute.xlu0 %1252
        %vm1255 = vcmask 523520
        %1256 = vst.msk [vmem:[%s166] sm:$0xff] %vm1255, %v1253
        %s1257 = sand.u32 %s79, 1
        %s1258 = scalar_lea.sflag [#allocation4], %s1257
        %s1259 = sand.u32 %s79, 1
        %s1260 = smul.addr %s1259, 8
        %s1261 = scalar_lea.vmem [#allocation5], %s1260
        // Predicated region
        $region29: #{tpu_custom_call.1} parent=23 // pred_check
          %p1262 = pneg %p89
        $region30: #{tpu_custom_call.1} parent=23 // pred_check_branch
          %1264 = sbr.rel (%p1262) target = $region32
        $region31: #{tpu_custom_call.1} parent=23 // pred_region
          %1266 = vsyncadd %s1258, 0
          %s1267 = smul.addr %s24, 2
          %s1268 = sadd.s32 %s25, %s1267
          %s1269 = smul.addr %s23, 2
          %s1270 = sadd.s32 %s1268, %s1269
          %s1271 = smul.addr %s1270, 8
          %s1272 = scalar_lea.hbm %s1, %s1271
          %s1274 = sshll.u32 %s1261, 4
          %s1275 = int_to_ptr.vmem [resolvable:$true] %s1274
          %s1276 = sshll.u32 %s1272, 4
          %s1277 = int_to_ptr.hbm [resolvable:$true] %s1276
          %1279 = dma.vmem_to_hbm [thread:$0]  %s1275, 128, %s1277, %s1258
        $region32: #{tpu_custom_call.1} parent=23 // pred_fallthru
          _
      $region24: #{tpu_custom_call.1} parent=5 // pred_fallthru
        _
      %p1280 = scmp.le.s32.totalorder 2, %s13
      // Predicated region
      $region33: #{tpu_custom_call.1} parent=5 // pred_check
        %p1281 = pneg %p1280
      $region34: #{tpu_custom_call.1} parent=5 // pred_check_branch
        %1283 = sbr.rel (%p1281) target = $region36
      $region35: #{tpu_custom_call.1} parent=5 // pred_region
        %s1284 = ssub.s32 %s13, 2
        // Predicated region
        $region37: #{tpu_custom_call.1} parent=35 // pred_check
          %p1285 = pneg %p95
        $region38: #{tpu_custom_call.1} parent=35 // pred_check_branch
          %1287 = sbr.rel (%p1285) target = $region40
        $region39: #{tpu_custom_call.1} parent=35 // pred_region
          %s1288 = sand.u32 %s80, 1
          %s1289 = scalar_lea.sflag [#allocation4], %s1288
          %s1290 = sand.u32 %s80, 1
          %s1291 = smul.addr %s1290, 8
          %s1292 = scalar_lea.vmem [#allocation5], %s1291
          %1294 = dma.done %s1289, 128
        $region40: #{tpu_custom_call.1} parent=35 // pred_fallthru
          _
      $region36: #{tpu_custom_call.1} parent=5 // pred_fallthru
        _
    $region6: #{tpu_custom_call.1} parent=1 // loop_footer
      %s17 = sadd.s32 1, %s13
    $region7: #{tpu_custom_call.1} parent=1 // loop_footer_branch
      %12 = sbr.rel target = $region3
    $region8: #{tpu_custom_call.1} parent=1 // loop_exit
      _
    %1295 = vsyncpa [#allocation3], 1
    %s1296 = scalar_lea.sflag [#allocation3], 1
    %1297 = vsyncpa %s1296, 1
    %1298 = vsyncpa [#allocation4], 1
    %s1299 = scalar_lea.sflag [#allocation4], 1
    %1300 = vsyncpa %s1299, 1

</llo_original>
